<compile_context>
chip_gen: v6e
topology: v6e:2x2x1
jax: 0.10.0
libtpu: 0.0.40
codegen_flags: <defaults>
</compile_context>

<pallas_src>
import numpy as np
import jax
import jax.numpy as jnp
from jax.experimental import pallas as pl
from jax.experimental.pallas import tpu as pltpu


# ---------------------------------------------------------------------------
# Pallas kernel: channel-concat copy  out[:, :C] = x ; out[:, C:] = a (bcast)
# ---------------------------------------------------------------------------
def concat_kernel(x_ref, a_ref, o_ref):
    """x_ref: (1, C, hw_t)   one batch row, all C data channels, one spatial tile
       a_ref: (K, hw_t)      batch-invariant upsampled alpha (same spatial tile)
       o_ref: (1, C+K, hw_t) output tile (channel concat)
    """
    C = x_ref.shape[1]
    o_ref[:, :C, :] = x_ref[...]
    o_ref[:, C:, :] = a_ref[...][None, :, :]


# ---------------------------------------------------------------------------
# One-time parameter setup (ConvTranspose weights -> dense matmul operands).
# ---------------------------------------------------------------------------
def _build_alpha_matrices(w1, w2, K):
    """Rearranged once at init (host-side)."""
    w1 = np.asarray(w1, np.float32)   # (K, K, 4, 4)  PyTorch (in, out, kH, kW)
    w2 = np.asarray(w2, np.float32)   # (K, K, 6, 6)

    # ConvT1, 1x1 input, stride 1, pad 0:  out1[o,p,q] = sum_k alpha[k]*w1[k,o,p,q]
    w1m = w1.reshape(K, K * 16)                       # cols = (o, 4*p+q)

    # ConvT2, stride 2, pad 1, k=6, 4x4 -> 10x10:
    #   out2[o,y,x] += out1[k,i,j]*w2[k,o,p,q], p=y-2i+1, q=x-2j+1, 0<=p,q<6
    sm4 = np.zeros((K, 16, K, 100), np.float32)
    for i in range(4):
        for j in range(4):
            for y in range(10):
                for xx in range(10):
                    p = y - 2 * i + 1
                    q = xx - 2 * j + 1
                    if 0 <= p < 6 and 0 <= q < 6:
                        sm4[:, 4 * i + j, :, 10 * y + xx] = w2[:, :, p, q]
    sm = sm4.reshape(K * 16, K * 100)                 # rows=(k,4i+j) cols=(o,10y+x)
    return jnp.asarray(w1m), jnp.asarray(sm)


# ---------------------------------------------------------------------------
# Tiling plan: byte-budget spatial tile + per-generation VMEM budget.
# ---------------------------------------------------------------------------
def _vmem_capacity_bytes():
    try:
        return int(pltpu.get_tpu_info().vmem_capacity_bytes)
    except Exception:
        return 64 * 1024 * 1024  # conservative (v7x has 64 MiB per TC)


def _plan_spatial_tiling(HW, C, K, itemsize, vmem_cap,
                         target_out_block_bytes=2 * 1024 * 1024):
    """Pick lane-dense hw_t (multiple of 128) so the output block is ~2 MiB,
    capped so the double-buffered footprint fits ~60% of VMEM.  HW is padded
    up to a multiple of hw_t (never a giant full-HW block)."""
    # Target from output-block byte budget.
    hw_t = (target_out_block_bytes // ((C + K) * itemsize)) // 128 * 128
    # Footprint cap: x + a + out blocks, 2 buffers each ≈ 4*(C+K)*hw_t*itemsize.
    budget = int(vmem_cap * 0.6)
    hw_cap = (budget // (4 * (C + K) * itemsize)) // 128 * 128
    # Never exceed the (128-padded) full spatial extent.
    hw_full = pl.cdiv(HW, 128) * 128
    hw_t = max(128, min(hw_t, hw_cap, hw_full))
    HW_pad = pl.cdiv(HW, hw_t) * hw_t
    n_hw = HW_pad // hw_t
    return hw_t, HW_pad, n_hw


# ---------------------------------------------------------------------------
# "Module init": precompute everything static, return a jitted forward fn.
# ---------------------------------------------------------------------------
def make_upsampler_forward(C, H, W, K, w1, w2):
    w1m, sm = _build_alpha_matrices(w1, w2, K)
    # nn.Upsample(mode='nearest'): src = floor(dst * in / out)
    sy_idx = np.array([(y * 10) // H for y in range(H)], np.int32)
    sx_idx = np.array([(x * 10) // W for x in range(W)], np.int32)
    HW = H * W
    vmem_cap = _vmem_capacity_bytes()
    vmem_limit = int(vmem_cap * 0.75)

    @jax.jit
    def forward(x, alpha):
        b = x.shape[0]
        dt = x.dtype
        itemsize = jnp.dtype(dt).itemsize

        # ---- alpha branch: batch-invariant, tiny — computed ONCE (f32). ----
        a0 = alpha.astype(jnp.float32).reshape(1, K)
        h1 = jnp.maximum(jnp.dot(a0, w1m, preferred_element_type=jnp.float32), 0.0)
        h2 = jnp.maximum(jnp.dot(h1, sm, preferred_element_type=jnp.float32), 0.0)
        h2 = h2.reshape(K, 10, 10)
        a_up = h2[:, sy_idx, :][:, :, sx_idx]          # (K, H, W) nearest upsample
        a_flat = a_up.reshape(K, HW).astype(dt)

        # ---- tiling plan (trace-time Python; dtype-dependent, zero runtime). ----
        hw_t, HW_pad, n_hw = _plan_spatial_tiling(HW, C, K, itemsize, vmem_cap)

        x3 = x.reshape(b, C, HW)
        if HW_pad != HW:
            pad = HW_pad - HW
            x3 = jnp.pad(x3, ((0, 0), (0, 0), (0, pad)))
            a_flat = jnp.pad(a_flat, ((0, 0), (0, pad)))

        # ---- Pallas: tiled, pipelined channel-concat materialization. ----
        # Grid is (spatial-tile, batch): the alpha block's index_map is constant
        # across the inner batch axis, so Pallas keeps it resident in VMEM and
        # only re-DMAs it when the spatial tile changes.
        grid_spec = pltpu.PrefetchScalarGridSpec(
            num_scalar_prefetch=0,
            grid=(n_hw, b),
            in_specs=[
                pl.BlockSpec((1, C, hw_t), lambda j, i: (i, 0, j)),
                pl.BlockSpec((K, hw_t), lambda j, i: (0, j)),
            ],
            out_specs=pl.BlockSpec((1, C + K, hw_t), lambda j, i: (i, 0, j)),
        )
        out3 = pl.pallas_call(
            concat_kernel,
            out_shape=jax.ShapeDtypeStruct((b, C + K, HW_pad), dt),
            grid_spec=grid_spec,
            compiler_params=pltpu.CompilerParams(
                dimension_semantics=("parallel", "parallel"),
                vmem_limit_bytes=vmem_limit),
            cost_estimate=pl.CostEstimate(
                flops=0,
                transcendentals=0,
                # x read once, alpha read once per spatial tile, output written once.
                bytes_accessed=int((b * C + K + b * (C + K)) * HW_pad * itemsize)),
        )(x3, a_flat)

        if HW_pad != HW:
            out3 = out3[:, :, :HW]
        out = out3.reshape(b, C + K, H, W)
        # TODO(synk): child_model is an external module passed to __init__; identity here.
        return out

    return forward


# ---------------------------------------------------------------------------
# Plain-numpy reference of the alpha branch (for the self-check only).
# ---------------------------------------------------------------------------
def _alpha_ref_np(alpha, w1, w2, H, W):
    K = alpha.shape[0]
    a1 = np.zeros((K, 4, 4), np.float32)
    for o in range(K):
        for k in range(K):
            a1[o] += alpha[k] * w1[k, o]
    a1 = np.maximum(a1, 0.0)
    a2 = np.zeros((K, 10, 10), np.float32)
    for o in range(K):
        for k in range(K):
            for i in range(4):
                for j in range(4):
                    for p in range(6):
                        for q in range(6):
                            y = 2 * i + p - 1
                            xx = 2 * j + q - 1
                            if 0 <= y < 10 and 0 <= xx < 10:
                                a2[o, y, xx] += a1[k, i, j] * w2[k, o, p, q]
    a2 = np.maximum(a2, 0.0)
    up = np.zeros((K, H, W), np.float32)
    for y in range(H):
        for xx in range(W):
            up[:, y, xx] = a2[:, (y * 10) // H, (xx * 10) // W]
    return up


if __name__ == "__main__":
    b, C, H, W, K = 2, 4, 16, 16, 4
    key = jax.random.PRNGKey(0)
    k1, k2, k3, k4 = jax.random.split(key, 4)
    x = jax.random.normal(k1, (b, C, H, W), jnp.float32)
    alpha = jax.random.normal(k2, (K,), jnp.float32)
    # Deterministic synthetic ConvTranspose2d weights (PyTorch layout: in, out, kH, kW).
    w1 = jax.random.normal(k3, (K, K, 4, 4), jnp.float32) * 0.1
    w2 = jax.random.normal(k4, (K, K, 6, 6), jnp.float32) * 0.1

    fwd = make_upsampler_forward(C, H, W, K, w1, w2)
    out = jax.block_until_ready(fwd(x, alpha))
    assert out.shape == (b, C + K, H, W)
    assert out.dtype == x.dtype

    # Self-check against a plain-numpy reference.
    out_np = np.asarray(out)
    ref_a = _alpha_ref_np(np.asarray(alpha), np.asarray(w1), np.asarray(w2), H, W)
    assert np.allclose(out_np[:, :C], np.asarray(x), atol=1e-5), "x-part mismatch"
    assert np.allclose(out_np[:, C:], np.broadcast_to(ref_a, (b, K, H, W)),
                       atol=1e-4), "alpha-part mismatch"
    print("KERNEL_OK")
</pallas_src>

<mosaic_0001>
module attributes {stable_mosaic.version = 11 : i64} {
  func.func @concat_kernel(%arg0: i32, %arg1: i32, %arg2: memref<1x4x256xf32, #tpu.memory_space<vmem>>, %arg3: memref<4x256xf32, #tpu.memory_space<vmem>>, %arg4: memref<1x8x256xf32, #tpu.memory_space<vmem>>) attributes {dimension_semantics = [#tpu.dimension_semantics<parallel>, #tpu.dimension_semantics<parallel>], iteration_bounds = array<i64: 1, 2>, scalar_prefetch = 0 : i64, scratch_operands = 0 : i64, tpu.core_type = #tpu.core_type<tc>, window_params = [{transform_indices = @transform_0, window_bounds = array<i64: 1, 4, 256>}, {transform_indices = @transform_1, window_bounds = array<i64: 4, 256>}, {transform_indices = @transform_2, window_bounds = array<i64: 1, 8, 256>}]} {
    %c0 = arith.constant 0 : index
    %c0_0 = arith.constant 0 : index
    %c0_1 = arith.constant 0 : index
    %0 = vector.load %arg2[%c0, %c0_0, %c0_1] : memref<1x4x256xf32, #tpu.memory_space<vmem>>, vector<1x4x256xf32>
    %c0_2 = arith.constant 0 : index
    %c0_3 = arith.constant 0 : index
    %c0_4 = arith.constant 0 : index
    %1 = vector.load %arg4[%c0_2, %c0_3, %c0_4] : memref<1x8x256xf32, #tpu.memory_space<vmem>>, vector<1x4x256xf32>
    tpu.vector_store %arg4[%c0_2, %c0_3, %c0_4], %0 {strides = array<i32>} : memref<1x8x256xf32, #tpu.memory_space<vmem>>, vector<1x4x256xf32>,
    %c0_5 = arith.constant 0 : index
    %c0_6 = arith.constant 0 : index
    %2 = vector.load %arg3[%c0_5, %c0_6] : memref<4x256xf32, #tpu.memory_space<vmem>>, vector<4x256xf32>
    %3 = vector.shape_cast %2 : vector<4x256xf32> to vector<1x4x256xf32>
    %c0_7 = arith.constant 0 : index
    %c4 = arith.constant 4 : index
    %c0_8 = arith.constant 0 : index
    %4 = vector.load %arg4[%c0_7, %c4, %c0_8] : memref<1x8x256xf32, #tpu.memory_space<vmem>>, vector<1x4x256xf32>
    tpu.vector_store %arg4[%c0_7, %c4, %c0_8], %3 {strides = array<i32>} : memref<1x8x256xf32, #tpu.memory_space<vmem>>, vector<1x4x256xf32>,
    return
  }
  func.func @transform_0(%arg0: i32, %arg1: i32) -> (i32, i32, i32) {
    %c0_i32 = arith.constant 0 : i32
    %c0_i32_0 = arith.constant 0 : i32
    return %arg1, %c0_i32, %arg0 : i32, i32, i32
  }
  func.func @transform_1(%arg0: i32, %arg1: i32) -> (i32, i32) {
    %c0_i32 = arith.constant 0 : i32
    %c0_i32_0 = arith.constant 0 : i32
    return %c0_i32, %arg0 : i32, i32
  }
  func.func @transform_2(%arg0: i32, %arg1: i32) -> (i32, i32, i32) {
    %c0_i32 = arith.constant 0 : i32
    %c0_i32_0 = arith.constant 0 : i32
    return %arg1, %c0_i32, %arg0 : i32, i32, i32
  }
}

</mosaic_0001>

<llo_original>
// kernel: forward.1
$region0: #{forward.1}
  #allocation0 [shape = 'u32[]', space=smem, size = 0x4, offset = 0x4, fixed_abs, tag = 'smem constant byte address 0x4 - core index']
  #allocation1 [shape = 'u32[144,128]{1,0:T(1,128)}', space=vmem, size = 0x12000, scoped, tag = 'internal scratch']
  %s0 = inlined_call_operand.vmem [shape: f32[2,4,256], index: 0, kind: input, shape index: {}]
  %s1 = inlined_call_operand.vmem [shape: f32[4,256], index: 1, kind: input, shape index: {}]
  %s2 = inlined_call_operand.vmem [shape: f32[2,8,256], index: 2, kind: output, shape index: {}]
  %s3 = sld [smem:[#allocation0]]
  $region41: #{forward.1} parent=0
    _
  %s5 = ssub.s32 1, %s3
  %s6 = scalar_select 0, %s5, %s3
  loop: start=0, step=1, limit=4
  $region2: #{forward.1} parent=0 // loop_pre_header
    _
  $region3: #{forward.1} parent=0 // loop_header
    %s8 = sphi 0, %s12
    %p9 = scmp.ge.s32.totalorder %s8, 4
    %s15 = sphi 0, %s27
    %s16 = sphi 0, %s23
    %s17 = sphi 0, %s15
    %s18 = sphi 0, %s16
    %s19 = sphi 0, %s17
    %s20 = sphi 0, %s18
    %s32 = sphi 0, %s34
    %s35 = sphi 0, %s32
    %s36 = sphi 0, %s35
    %s52 = sphi 0, %s36
    %s58 = sphi 0, %s60
    %s61 = sphi 0, %s58
    %s62 = sphi 0, %s61
    %s78 = sphi 0, %s62
    %s86 = sphi 0, %s88
    %s89 = sphi 0, %s86
    %s90 = sphi 0, %s89
    %s106 = sphi 0, %s90
  $region4: #{forward.1} parent=0 // loop_header_branch
    %11 = sbr.rel (%p9) target = $region8
  $region5: #{forward.1} parent=0 // loop_body
    %s13 = ssub.s32 %s8, 1
    %s14 = ssub.s32 %s8, 2
    %s21 = sadd.s32 1, %s16
    %p22 = scmp.ge.s32.totalorder %s21, 2
    %s23 = scalar_select %p22, 0, %s21
    %s24 = sadd.s32 1, %s15
    %s25 = scalar_select %p22, %s24, %s15
    %p26 = scmp.ge.s32.totalorder %s25, 1
    %s27 = scalar_select %p26, 0, %s25
    %s28 = ssub.s32 %s16, %s23
    %s29 = ssub.s32 %s15, %s27
    %s30 = sor.u32 %s28, %s29
    %p31 = scmp.eq.s32.totalorder %s30, 0
    %s33 = sadd.s32 %s32, 1
    %s34 = scalar_select %p31, %s32, %s33
    %p37 = pneg %p31
    %p38 = scmp.eq.s32.totalorder %s8, 1
    %p39 = por %p37, %p38
    %p40 = scmp.ne.s32.totalorder %s32, %s35
    %p41 = scmp.eq.s32.totalorder %s8, 0
    %p42 = por %p40, %p41
    %p43 = scmp.ne.s32.totalorder %s32, %s35
    %p44 = scmp.eq.s32.totalorder %s13, 1
    %p45 = por %p43, %p44
    %p46 = scmp.ne.s32.totalorder %s35, %s36
    %p47 = scmp.eq.s32.totalorder %s13, 0
    %p48 = por %p46, %p47
    %p49 = scmp.ne.s32.totalorder %s35, %s36
    %p50 = scmp.eq.s32.totalorder %s14, 1
    %p51 = por %p49, %p50
    %p53 = scmp.ne.s32.totalorder %s36, %s52
    %p54 = scmp.eq.s32.totalorder %s14, 0
    %p55 = por %p53, %p54
    %s56 = ssub.s32 %s15, %s27
    %p57 = scmp.eq.s32.totalorder %s56, 0
    %s59 = sadd.s32 %s58, 1
    %s60 = scalar_select %p57, %s58, %s59
    %p63 = pneg %p57
    %p64 = scmp.eq.s32.totalorder %s8, 1
    %p65 = por %p63, %p64
    %p66 = scmp.ne.s32.totalorder %s58, %s61
    %p67 = scmp.eq.s32.totalorder %s8, 0
    %p68 = por %p66, %p67
    %p69 = scmp.ne.s32.totalorder %s58, %s61
    %p70 = scmp.eq.s32.totalorder %s13, 1
    %p71 = por %p69, %p70
    %p72 = scmp.ne.s32.totalorder %s61, %s62
    %p73 = scmp.eq.s32.totalorder %s13, 0
    %p74 = por %p72, %p73
    %p75 = scmp.ne.s32.totalorder %s61, %s62
    %p76 = scmp.eq.s32.totalorder %s14, 1
    %p77 = por %p75, %p76
    %p79 = scmp.ne.s32.totalorder %s62, %s78
    %p80 = scmp.eq.s32.totalorder %s14, 0
    %p81 = por %p79, %p80
    %s82 = ssub.s32 %s16, %s23
    %s83 = ssub.s32 %s15, %s27
    %s84 = sor.u32 %s82, %s83
    %p85 = scmp.eq.s32.totalorder %s84, 0
    %s87 = sadd.s32 %s86, 1
    %s88 = scalar_select %p85, %s86, %s87
    %p91 = pneg %p85
    %p92 = scmp.eq.s32.totalorder %s8, 1
    %p93 = por %p91, %p92
    %p94 = scmp.ne.s32.totalorder %s86, %s89
    %p95 = scmp.eq.s32.totalorder %s8, 0
    %p96 = por %p94, %p95
    %p97 = scmp.ne.s32.totalorder %s86, %s89
    %p98 = scmp.eq.s32.totalorder %s13, 1
    %p99 = por %p97, %p98
    %p100 = scmp.ne.s32.totalorder %s89, %s90
    %p101 = scmp.eq.s32.totalorder %s13, 0
    %p102 = por %p100, %p101
    %p103 = scmp.ne.s32.totalorder %s89, %s90
    %p104 = scmp.eq.s32.totalorder %s14, 1
    %p105 = por %p103, %p104
    %p107 = scmp.ne.s32.totalorder %s90, %s106
    %p108 = scmp.eq.s32.totalorder %s14, 0
    %p109 = por %p107, %p108
    %p110 = scmp.le.s32.totalorder 1, %s8
    %p111 = scmp.lt.s32.totalorder %s8, 3
    %p112 = pnand %p110, %p111
    %p113 = pneg %p112
    // Predicated region
    $region9: #{forward.1} parent=5 // pred_check
      _
    $region10: #{forward.1} parent=5 // pred_check_branch
      %115 = sbr.rel (%p112) target = $region12
    $region11: #{forward.1} parent=5 // pred_region
      %s116 = ssub.s32 %s8, 1
      // Predicated region
      $region13: #{forward.1} parent=11 // pred_check
        %p117 = pneg %p74
      $region14: #{forward.1} parent=11 // pred_check_branch
        %119 = sbr.rel (%p117) target = $region16
      $region15: #{forward.1} parent=11 // pred_region
        %s120 = smul.u32 2, %s17
        %p121 = scmp.lt.s32.totalorder %s120, 1
        %s122 = scalar_select %p121, %s120, 1
        %s123 = smul.addr %s122, 4
        %s124 = scalar_lea.vmem %s1, %s123
        %s125 = smul.u32 2, %s17
      $region16: #{forward.1} parent=11 // pred_fallthru
        _
    $region12: #{forward.1} parent=5 // pred_fallthru
      _
    %p126 = scmp.lt.s32.totalorder %s8, 2
    // Predicated region
    $region17: #{forward.1} parent=5 // pred_check
      %p127 = pneg %p126
    $region18: #{forward.1} parent=5 // pred_check_branch
      %129 = sbr.rel (%p127) target = $region20
    $region19: #{forward.1} parent=5 // pred_region
      // Predicated region
      $region21: #{forward.1} parent=19 // pred_check
        %p130 = pneg %p42
      $region22: #{forward.1} parent=19 // pred_check_branch
        %132 = sbr.rel (%p130) target = $region24
      $region23: #{forward.1} parent=19 // pred_region
        %s133 = smul.u32 2, %s15
        %p134 = scmp.lt.s32.totalorder %s16, 1
        %s135 = scalar_select %p134, %s16, 1
        %p136 = scmp.lt.s32.totalorder %s133, 1
        %s137 = scalar_select %p136, %s133, 1
        %s138 = smul.addr %s135, 2
        %s139 = sadd.s32 %s137, %s138
        %s140 = smul.addr %s139, 4
        %s141 = scalar_lea.vmem %s0, %s140
        %s142 = smul.u32 2, %s15
      $region24: #{forward.1} parent=19 // pred_fallthru
        _
    $region20: #{forward.1} parent=5 // pred_fallthru
      _
    %p143 = scmp.le.s32.totalorder 1, %s8
    %p144 = scmp.lt.s32.totalorder %s8, 3
    %p145 = pnand %p143, %p144
    %p146 = pneg %p145
    // Predicated region
    $region25: #{forward.1} parent=5 // pred_check
      _
    $region26: #{forward.1} parent=5 // pred_check_branch
      %148 = sbr.rel (%p145) target = $region28
    $region27: #{forward.1} parent=5 // pred_region
      %s149 = ssub.s32 %s8, 1
      %s150 = smul.u32 2, %s17
      %p151 = scmp.lt.s32.totalorder %s18, 1
      %s152 = scalar_select %p151, %s18, 1
      %p153 = scmp.lt.s32.totalorder %s150, 1
      %s154 = scalar_select %p153, %s150, 1
      %s155 = smul.addr %s152, 2
      %s156 = sadd.s32 %s154, %s155
      %s157 = smul.addr %s156, 4
      %s158 = scalar_lea.vmem %s0, %s157
      %p159 = pneg %p48
      %p160 = pneg %p45
      %s161 = smul.u32 2, %s17
      %p162 = scmp.lt.s32.totalorder %s161, 1
      %s163 = scalar_select %p162, %s161, 1
      %s164 = smul.addr %s163, 4
      %s165 = scalar_lea.vmem %s1, %s164
      %p166 = pneg %p74
      %p167 = pneg %p71
      %p168 = pneg %p102
      %p169 = pneg %p99
      %s170 = smul.u32 2, %s17
      %p171 = scmp.lt.s32.totalorder %s18, 1
      %s172 = scalar_select %p171, %s18, 1
      %p173 = scmp.lt.s32.totalorder %s170, 1
      %s174 = scalar_select %p173, %s170, 1
      %s175 = smul.addr %s172, 2
      %s176 = sadd.s32 %s174, %s175
      %s177 = smul.addr %s176, 8
      %s178 = scalar_lea.vmem %s2, %s177
      %s179 = smul.u32 2, %s17
      %p180 = scmp.lt.s32.totalorder %s18, 1
      %s181 = scalar_select %p180, %s18, 1
      %p182 = scmp.lt.s32.totalorder %s179, 1
      %s183 = scalar_select %p182, %s179, 1
      %s184 = smul.addr %s181, 2
      %s185 = sadd.s32 %s183, %s184
      %s186 = smul.addr %s185, 4
      %s187 = scalar_lea.vmem %s0, %s186
      %s188 = smul.u32 2, %s17
      %s189 = smul.u32 2, %s17
      %p190 = scmp.lt.s32.totalorder %s189, 1
      %s191 = scalar_select %p190, %s189, 1
      %s192 = smul.addr %s191, 4
      %s193 = scalar_lea.vmem %s1, %s192
      %s194 = smul.u32 2, %s17
      %s195 = smul.u32 2, %s17
      %p196 = scmp.lt.s32.totalorder %s18, 1
      %s197 = scalar_select %p196, %s18, 1
      %p198 = scmp.lt.s32.totalorder %s195, 1
      %s199 = scalar_select %p198, %s195, 1
      %s200 = smul.addr %s197, 2
      %s201 = sadd.s32 %s199, %s200
      %s202 = smul.addr %s201, 8
      %s203 = scalar_lea.vmem %s2, %s202
      %s204 = smul.u32 2, %s17
      %v205 = vld [vmem:[%s187] sm:$0xff]
      %v207 = vcombine.high %v205, %v205
      %209 = vst [vmem:[%s203] sm:$0xf] %v205
      %210 = vst [vmem:[%s203 + $0x8] sm:$0xf] %v207
      %v211 = vld [vmem:[%s193] sm:$0xff]
      %v213 = vcombine.low %v211, %v211
      %215 = vst [vmem:[%s203] sm:$0xf0] %v213
      %216 = vst [vmem:[%s203 + $0x8] sm:$0xf0] %v211
      %s217 = smul.u32 2, %s17
      %p218 = scmp.lt.s32.totalorder %s18, 1
      %s219 = scalar_select %p218, %s18, 1
      %p220 = scmp.lt.s32.totalorder %s217, 1
      %s221 = scalar_select %p220, %s217, 1
      %s222 = smul.addr %s219, 2
      %s223 = sadd.s32 %s221, %s222
      %s224 = smul.addr %s223, 8
      %s225 = scalar_lea.vmem %s2, %s224
      // Predicated region
      $region29: #{forward.1} parent=27 // pred_check
        %p226 = pneg %p99
      $region30: #{forward.1} parent=27 // pred_check_branch
        %228 = sbr.rel (%p226) target = $region32
      $region31: #{forward.1} parent=27 // pred_region
        %s229 = smul.u32 2, %s17
      $region32: #{forward.1} parent=27 // pred_fallthru
        _
    $region28: #{forward.1} parent=5 // pred_fallthru
      _
    %p230 = scmp.le.s32.totalorder 2, %s8
    // Predicated region
    $region33: #{forward.1} parent=5 // pred_check
      %p231 = pneg %p230
    $region34: #{forward.1} parent=5 // pred_check_branch
      %233 = sbr.rel (%p231) target = $region36
    $region35: #{forward.1} parent=5 // pred_region
      %s234 = ssub.s32 %s8, 2
      // Predicated region
      $region37: #{forward.1} parent=35 // pred_check
        %p235 = pneg %p105
      $region38: #{forward.1} parent=35 // pred_check_branch
        %237 = sbr.rel (%p235) target = $region40
      $region39: #{forward.1} parent=35 // pred_region
        %s238 = smul.u32 2, %s19
        %p239 = scmp.lt.s32.totalorder %s20, 1
        %s240 = scalar_select %p239, %s20, 1
        %p241 = scmp.lt.s32.totalorder %s238, 1
        %s242 = scalar_select %p241, %s238, 1
        %s243 = smul.addr %s240, 2
        %s244 = sadd.s32 %s242, %s243
        %s245 = smul.addr %s244, 8
        %s246 = scalar_lea.vmem %s2, %s245
      $region40: #{forward.1} parent=35 // pred_fallthru
        _
    $region36: #{forward.1} parent=5 // pred_fallthru
      _
  $region6: #{forward.1} parent=0 // loop_footer
    %s12 = sadd.s32 1, %s8
  $region7: #{forward.1} parent=0 // loop_footer_branch
    %7 = sbr.rel target = $region3
  $region8: #{forward.1} parent=0 // loop_exit
    _

</llo_original>
